<compile_context>
chip_gen: v6e
topology: v6e:2x2x1
jax: 0.10.0
libtpu: 0.0.40
codegen_flags: <defaults>
</compile_context>

<pallas_src>
import jax
import jax.numpy as jnp
import numpy as np
from jax.experimental import pallas as pl
from jax.experimental.pallas import tpu as pltpu


# Per-input-block VMEM budget (bytes).  Double-buffered this stays well under
# the scoped VMEM limit on every generation (v5e 16 MiB default, v7x 64 MiB
# physical).
_BLOCK_BUDGET_BYTES = 4 * 1024 * 1024


def _partial_sums_kernel(logits_ref, labels_ref, mask_ref, triu_ref, out_ref):
    """Per-grid-step partial sums.

    logits_ref: (NL, Bt, LL)  native logits dtype
    labels_ref: (Bt, LL)      int32
    mask_ref:   (Bt, LL)      bool  (span_mask != 0)
    triu_ref:   (1, LL)       bool  (flattened upper-triangular mask)
    out_ref:    (1, 8, 128)   f32 partial sums for this program:
        sublane 0: sum(corr)   sublane 1: sum(y_true)  sublane 2: sum(y_pred)
        sublane 3: sum(labels) sublane 4: sum(pred)
    """
    nl = logits_ref.shape[0]

    maskf = mask_ref[...].astype(jnp.float32)          # (Bt, LL)

    # Unrolled running argmax over the label axis (first occurrence of max),
    # replicating `argmax(logits * span_mask, axis=-1)`.
    best_val = logits_ref[0].astype(jnp.float32) * maskf
    best_idx = jnp.zeros(best_val.shape, dtype=jnp.int32)
    for i in range(1, nl):
        v = logits_ref[i].astype(jnp.float32) * maskf
        better = v > best_val
        best_val = jnp.where(better, v, best_val)
        best_idx = jnp.where(better, i, best_idx)

    labels = labels_ref[...]                           # (Bt, LL) int32
    labf = labels.astype(jnp.float32)
    predf = best_idx.astype(jnp.float32)
    triuf = triu_ref[...].astype(jnp.float32)          # (1, LL)

    y_true = (labels >= 1).astype(jnp.float32)                  # where(lab<1,0,1)
    y_pred = (best_idx >= 1).astype(jnp.float32) * triuf        # triu-masked
    corr = jnp.where(best_idx == labels, 1.0, 0.0) * y_true

    s_corr = jnp.sum(corr)
    s_true = jnp.sum(y_true)
    s_pred = jnp.sum(y_pred)
    s_lab = jnp.sum(labf)
    s_pidx = jnp.sum(predf)

    sub = jax.lax.broadcasted_iota(jnp.int32, (8, 128), 0)
    buf = jnp.where(sub == 0, s_corr, 0.0)
    buf = jnp.where(sub == 1, s_true, buf)
    buf = jnp.where(sub == 2, s_pred, buf)
    buf = jnp.where(sub == 3, s_lab, buf)
    buf = jnp.where(sub == 4, s_pidx, buf)
    out_ref[0] = buf


@jax.jit
def metrics_span(logits, labels, span_mask):
    """Forward pass of the PyTorch metrics_span module.

    Returns (recall, precision, f1) as f32 device scalars.
    """
    B, L, L2, NL = logits.shape
    assert L == L2
    assert labels.shape == (B, L, L) == span_mask.shape
    LL = L * L

    # ---- wrapper-side layout plumbing (no f32 upcast of logits) ----------
    logits_t = jnp.transpose(logits.reshape(B, LL, NL), (2, 0, 1))  # (NL, B, LL)
    labels2d = labels.astype(jnp.int32).reshape(B, LL)
    # span_mask is documented as 0/1; bool keeps HBM traffic at 1 byte/elem.
    mask2d = (span_mask != 0).reshape(B, LL)
    row = jnp.arange(L, dtype=jnp.int32)[:, None]
    col = jnp.arange(L, dtype=jnp.int32)[None, :]
    triu = (col >= row).reshape(1, LL)                              # bool

    # ---- batch-block sizing (Bt elements per grid step) ------------------
    per_b = NL * LL * logits.dtype.itemsize + LL * 4 + LL * 1
    max_bt = max(1, _BLOCK_BUDGET_BYTES // per_b)
    if B <= max_bt:
        bt = B                       # single block: full-extent second-minor dim
    else:
        bt = max(8, (max_bt // 8) * 8)   # multiple of 8 for valid sublane tiling
    nb = -(-B // bt)
    b_pad = nb * bt
    if b_pad != B:
        # Zero padding is correctness-neutral: padded rows contribute 0 to
        # every accumulated sum.
        pad = b_pad - B
        logits_t = jnp.pad(logits_t, ((0, 0), (0, pad), (0, 0)))
        labels2d = jnp.pad(labels2d, ((0, pad), (0, 0)))
        mask2d = jnp.pad(mask2d, ((0, pad), (0, 0)))

    partial = pl.pallas_call(
        _partial_sums_kernel,
        out_shape=jax.ShapeDtypeStruct((nb, 8, 128), jnp.float32),
        grid_spec=pltpu.PrefetchScalarGridSpec(
            num_scalar_prefetch=0,
            grid=(nb,),
            in_specs=[
                pl.BlockSpec((NL, bt, LL), lambda b: (0, b, 0)),
                pl.BlockSpec((bt, LL), lambda b: (b, 0)),
                pl.BlockSpec((bt, LL), lambda b: (b, 0)),
                pl.BlockSpec((1, LL), lambda b: (0, 0)),
            ],
            out_specs=pl.BlockSpec((1, 8, 128), lambda b: (b, 0, 0)),
        ),
        compiler_params=pltpu.CompilerParams(
            dimension_semantics=("parallel",),
            vmem_limit_bytes=32 * 1024 * 1024,
        ),
    )(logits_t, labels2d, mask2d, triu)

    # ---- tiny jitted epilogue: reduce partials + metrics + special case ---
    sums = jnp.sum(partial[:, :5, 0], axis=0)        # (5,) f32
    s_corr, s_true, s_pred, s_lab, s_pidx = (sums[0], sums[1], sums[2],
                                             sums[3], sums[4])
    recall = s_corr / (s_true + 1e-8)
    precision = s_corr / (s_pred + 1e-8)
    f1 = 2.0 * recall * precision / (recall + precision + 1e-8)
    # NOTE: counts are exact in f32 up to ~16.7M counted elements.
    trivial = jnp.logical_and(s_lab == 0.0, s_pidx == 0.0)
    one = jnp.float32(1.0)
    return (jnp.where(trivial, one, recall),
            jnp.where(trivial, one, precision),
            jnp.where(trivial, one, f1))


def _reference_jax(logits, labels, span_mask):
    """Pure-JAX reference replicating the (intended) PyTorch semantics."""
    lg = logits.astype(jnp.float32) * span_mask.astype(jnp.float32)[..., None]
    pred = jnp.argmax(lg, axis=-1).astype(jnp.float32)
    lab = labels.astype(jnp.float32)
    y_pred = jnp.where(pred < 1, 0.0, 1.0)
    L = logits.shape[1]
    triu = jnp.triu(jnp.ones((L, L), jnp.float32))
    y_pred = y_pred * triu[None]
    y_true = jnp.where(lab < 1, 0.0, 1.0)
    corr = (pred == lab).astype(jnp.float32) * y_true
    recall = jnp.sum(corr) / (jnp.sum(y_true) + 1e-8)
    precision = jnp.sum(corr) / (jnp.sum(y_pred) + 1e-8)
    f1 = 2 * recall * precision / (recall + precision + 1e-8)
    if float(jnp.sum(lab)) == 0.0 and float(jnp.sum(pred)) == 0.0:
        return (1.0, 1.0, 1.0)
    return (float(recall), float(precision), float(f1))


if __name__ == "__main__":
    bsz, max_length, num_labels = 2, 16, 8
    key = jax.random.PRNGKey(0)
    k1, k2, k3 = jax.random.split(key, 3)

    logits = jax.random.normal(k1, (bsz, max_length, max_length, num_labels),
                               dtype=jnp.float32)
    labels = jax.random.randint(k2, (bsz, max_length, max_length), 0, num_labels)
    # span_mask: lower triangle all ones + some upper-triangle positions set.
    tri = jnp.tril(jnp.ones((max_length, max_length), jnp.float32))
    rand_up = (jax.random.uniform(k3, (bsz, max_length, max_length)) > 0.5
               ).astype(jnp.float32)
    span_mask = jnp.clip(tri[None] + rand_up, 0.0, 1.0)

    got = jax.block_until_ready(metrics_span(logits, labels, span_mask))
    want = _reference_jax(logits, labels, span_mask)
    assert np.allclose(np.asarray(got, dtype=np.float32),
                       np.asarray(want, dtype=np.float32),
                       rtol=1e-5, atol=1e-5), (got, want)

    # Degenerate case: all-zero labels and all-zero logits -> (1, 1, 1).
    zero_logits = jnp.zeros_like(logits)
    zero_labels = jnp.zeros_like(labels)
    got0 = jax.block_until_ready(metrics_span(zero_logits, zero_labels, span_mask))
    assert np.allclose(np.asarray(got0, dtype=np.float32),
                       np.ones(3, np.float32)), got0

    print("KERNEL_OK")
</pallas_src>

<mosaic_0001>
module attributes {stable_mosaic.version = 11 : i64} {
  func.func @_partial_sums_kernel(%arg0: i32, %arg1: memref<8x2x256xf32, #tpu.memory_space<vmem>>, %arg2: memref<2x256xi32, #tpu.memory_space<vmem>>, %arg3: memref<2x256xi32, #tpu.memory_space<vmem>>, %arg4: memref<1x256xi32, #tpu.memory_space<vmem>>, %arg5: memref<1x8x128xf32, #tpu.memory_space<vmem>>) attributes {dimension_semantics = [#tpu.dimension_semantics<parallel>], iteration_bounds = array<i64: 1>, scalar_prefetch = 0 : i64, scratch_operands = 0 : i64, tpu.core_type = #tpu.core_type<tc>, window_params = [{transform_indices = @transform_0, window_bounds = array<i64: 8, 2, 256>}, {transform_indices = @transform_1, window_bounds = array<i64: 2, 256>}, {transform_indices = @transform_2, window_bounds = array<i64: 2, 256>}, {pipeline_mode = #tpu.pipeline_mode<synchronous>, transform_indices = @transform_3, window_bounds = array<i64: 1, 256>}, {transform_indices = @transform_4, window_bounds = array<i64: 1, 8, 128>}]} {
    %c0 = arith.constant 0 : index
    %c0_0 = arith.constant 0 : index
    %0 = vector.load %arg3[%c0, %c0_0] : memref<2x256xi32, #tpu.memory_space<vmem>>, vector<2x256xi32>
    %cst = arith.constant dense<0> : vector<2x256xi32>
    %1 = arith.cmpi ne, %0, %cst : vector<2x256xi32>
    %2 = arith.extui %1 : vector<2x256xi1> to vector<2x256xi32>
    %3 = arith.sitofp %2 : vector<2x256xi32> to vector<2x256xf32>
    %c0_1 = arith.constant 0 : index
    %c0_2 = arith.constant 0 : index
    %c0_3 = arith.constant 0 : index
    %4 = vector.load %arg1[%c0_1, %c0_2, %c0_3] : memref<8x2x256xf32, #tpu.memory_space<vmem>>, vector<1x2x256xf32>
    %5 = vector.shape_cast %4 : vector<1x2x256xf32> to vector<2x256xf32>
    %6 = arith.mulf %5, %3 : vector<2x256xf32>
    %c0_i32 = arith.constant 0 : i32
    %7 = vector.broadcast %c0_i32 : i32 to vector<2x256xi32>
    %c1 = arith.constant 1 : index
    %c0_4 = arith.constant 0 : index
    %c0_5 = arith.constant 0 : index
    %8 = vector.load %arg1[%c1, %c0_4, %c0_5] : memref<8x2x256xf32, #tpu.memory_space<vmem>>, vector<1x2x256xf32>
    %9 = vector.shape_cast %8 : vector<1x2x256xf32> to vector<2x256xf32>
    %10 = arith.mulf %9, %3 : vector<2x256xf32>
    %11 = arith.cmpf ogt, %10, %6 : vector<2x256xf32>
    %12 = arith.select %11, %10, %6 : vector<2x256xi1>, vector<2x256xf32>
    %c1_i32 = arith.constant 1 : i32
    %13 = vector.broadcast %c1_i32 : i32 to vector<2x256xi32>
    %14 = arith.select %11, %13, %7 : vector<2x256xi1>, vector<2x256xi32>
    %c2 = arith.constant 2 : index
    %c0_6 = arith.constant 0 : index
    %c0_7 = arith.constant 0 : index
    %15 = vector.load %arg1[%c2, %c0_6, %c0_7] : memref<8x2x256xf32, #tpu.memory_space<vmem>>, vector<1x2x256xf32>
    %16 = vector.shape_cast %15 : vector<1x2x256xf32> to vector<2x256xf32>
    %17 = arith.mulf %16, %3 : vector<2x256xf32>
    %18 = arith.cmpf ogt, %17, %12 : vector<2x256xf32>
    %19 = arith.select %18, %17, %12 : vector<2x256xi1>, vector<2x256xf32>
    %c2_i32 = arith.constant 2 : i32
    %20 = vector.broadcast %c2_i32 : i32 to vector<2x256xi32>
    %21 = arith.select %18, %20, %14 : vector<2x256xi1>, vector<2x256xi32>
    %c3 = arith.constant 3 : index
    %c0_8 = arith.constant 0 : index
    %c0_9 = arith.constant 0 : index
    %22 = vector.load %arg1[%c3, %c0_8, %c0_9] : memref<8x2x256xf32, #tpu.memory_space<vmem>>, vector<1x2x256xf32>
    %23 = vector.shape_cast %22 : vector<1x2x256xf32> to vector<2x256xf32>
    %24 = arith.mulf %23, %3 : vector<2x256xf32>
    %25 = arith.cmpf ogt, %24, %19 : vector<2x256xf32>
    %26 = arith.select %25, %24, %19 : vector<2x256xi1>, vector<2x256xf32>
    %c3_i32 = arith.constant 3 : i32
    %27 = vector.broadcast %c3_i32 : i32 to vector<2x256xi32>
    %28 = arith.select %25, %27, %21 : vector<2x256xi1>, vector<2x256xi32>
    %c4 = arith.constant 4 : index
    %c0_10 = arith.constant 0 : index
    %c0_11 = arith.constant 0 : index
    %29 = vector.load %arg1[%c4, %c0_10, %c0_11] : memref<8x2x256xf32, #tpu.memory_space<vmem>>, vector<1x2x256xf32>
    %30 = vector.shape_cast %29 : vector<1x2x256xf32> to vector<2x256xf32>
    %31 = arith.mulf %30, %3 : vector<2x256xf32>
    %32 = arith.cmpf ogt, %31, %26 : vector<2x256xf32>
    %33 = arith.select %32, %31, %26 : vector<2x256xi1>, vector<2x256xf32>
    %c4_i32 = arith.constant 4 : i32
    %34 = vector.broadcast %c4_i32 : i32 to vector<2x256xi32>
    %35 = arith.select %32, %34, %28 : vector<2x256xi1>, vector<2x256xi32>
    %c5 = arith.constant 5 : index
    %c0_12 = arith.constant 0 : index
    %c0_13 = arith.constant 0 : index
    %36 = vector.load %arg1[%c5, %c0_12, %c0_13] : memref<8x2x256xf32, #tpu.memory_space<vmem>>, vector<1x2x256xf32>
    %37 = vector.shape_cast %36 : vector<1x2x256xf32> to vector<2x256xf32>
    %38 = arith.mulf %37, %3 : vector<2x256xf32>
    %39 = arith.cmpf ogt, %38, %33 : vector<2x256xf32>
    %40 = arith.select %39, %38, %33 : vector<2x256xi1>, vector<2x256xf32>
    %c5_i32 = arith.constant 5 : i32
    %41 = vector.broadcast %c5_i32 : i32 to vector<2x256xi32>
    %42 = arith.select %39, %41, %35 : vector<2x256xi1>, vector<2x256xi32>
    %c6 = arith.constant 6 : index
    %c0_14 = arith.constant 0 : index
    %c0_15 = arith.constant 0 : index
    %43 = vector.load %arg1[%c6, %c0_14, %c0_15] : memref<8x2x256xf32, #tpu.memory_space<vmem>>, vector<1x2x256xf32>
    %44 = vector.shape_cast %43 : vector<1x2x256xf32> to vector<2x256xf32>
    %45 = arith.mulf %44, %3 : vector<2x256xf32>
    %46 = arith.cmpf ogt, %45, %40 : vector<2x256xf32>
    %47 = arith.select %46, %45, %40 : vector<2x256xi1>, vector<2x256xf32>
    %c6_i32 = arith.constant 6 : i32
    %48 = vector.broadcast %c6_i32 : i32 to vector<2x256xi32>
    %49 = arith.select %46, %48, %42 : vector<2x256xi1>, vector<2x256xi32>
    %c7 = arith.constant 7 : index
    %c0_16 = arith.constant 0 : index
    %c0_17 = arith.constant 0 : index
    %50 = vector.load %arg1[%c7, %c0_16, %c0_17] : memref<8x2x256xf32, #tpu.memory_space<vmem>>, vector<1x2x256xf32>
    %51 = vector.shape_cast %50 : vector<1x2x256xf32> to vector<2x256xf32>
    %52 = arith.mulf %51, %3 : vector<2x256xf32>
    %53 = arith.cmpf ogt, %52, %47 : vector<2x256xf32>
    %c7_i32 = arith.constant 7 : i32
    %54 = vector.broadcast %c7_i32 : i32 to vector<2x256xi32>
    %55 = arith.select %53, %54, %49 : vector<2x256xi1>, vector<2x256xi32>
    %c0_18 = arith.constant 0 : index
    %c0_19 = arith.constant 0 : index
    %56 = vector.load %arg2[%c0_18, %c0_19] : memref<2x256xi32, #tpu.memory_space<vmem>>, vector<2x256xi32>
    %57 = arith.sitofp %56 : vector<2x256xi32> to vector<2x256xf32>
    %58 = arith.sitofp %55 : vector<2x256xi32> to vector<2x256xf32>
    %c0_20 = arith.constant 0 : index
    %c0_21 = arith.constant 0 : index
    %59 = vector.load %arg4[%c0_20, %c0_21] : memref<1x256xi32, #tpu.memory_space<vmem>>, vector<1x256xi32>
    %cst_22 = arith.constant dense<0> : vector<1x256xi32>
    %60 = arith.cmpi ne, %59, %cst_22 : vector<1x256xi32>
    %61 = arith.extui %60 : vector<1x256xi1> to vector<1x256xi32>
    %62 = arith.sitofp %61 : vector<1x256xi32> to vector<1x256xf32>
    %c1_i32_23 = arith.constant 1 : i32
    %63 = vector.broadcast %c1_i32_23 : i32 to vector<2x256xi32>
    %64 = arith.cmpi sge, %56, %63 : vector<2x256xi32>
    %65 = arith.extui %64 : vector<2x256xi1> to vector<2x256xi32>
    %66 = arith.sitofp %65 : vector<2x256xi32> to vector<2x256xf32>
    %c1_i32_24 = arith.constant 1 : i32
    %67 = vector.broadcast %c1_i32_24 : i32 to vector<2x256xi32>
    %68 = arith.cmpi sge, %55, %67 : vector<2x256xi32>
    %69 = arith.extui %68 : vector<2x256xi1> to vector<2x256xi32>
    %70 = arith.sitofp %69 : vector<2x256xi32> to vector<2x256xf32>
    %71 = vector.broadcast %62 : vector<1x256xf32> to vector<2x256xf32>
    %72 = arith.mulf %70, %71 : vector<2x256xf32>
    %73 = arith.cmpi eq, %55, %56 : vector<2x256xi32>
    %cst_25 = arith.constant 1.000000e+00 : f32
    %cst_26 = arith.constant 0.000000e+00 : f32
    %74 = vector.broadcast %cst_25 : f32 to vector<2x256xf32>
    %75 = vector.broadcast %cst_26 : f32 to vector<2x256xf32>
    %76 = arith.select %73, %74, %75 : vector<2x256xi1>, vector<2x256xf32>
    %77 = arith.mulf %76, %66 : vector<2x256xf32>
    %78 = vector.shape_cast %77 : vector<2x256xf32> to vector<1x2x256xf32>
    %cst_27 = arith.constant dense<0.000000e+00> : vector<1xf32>
    %79 = vector.multi_reduction <add>, %78, %cst_27 [1, 2] : vector<1x2x256xf32> to vector<1xf32>
    %80 = vector.shape_cast %79 : vector<1xf32> to vector<1x1x1xf32>
    %81 = vector.extract %80[0, 0, 0] : f32 from vector<1x1x1xf32>
    %82 = vector.shape_cast %66 : vector<2x256xf32> to vector<1x2x256xf32>
    %cst_28 = arith.constant dense<0.000000e+00> : vector<1xf32>
    %83 = vector.multi_reduction <add>, %82, %cst_28 [1, 2] : vector<1x2x256xf32> to vector<1xf32>
    %84 = vector.shape_cast %83 : vector<1xf32> to vector<1x1x1xf32>
    %85 = vector.extract %84[0, 0, 0] : f32 from vector<1x1x1xf32>
    %86 = vector.shape_cast %72 : vector<2x256xf32> to vector<1x2x256xf32>
    %cst_29 = arith.constant dense<0.000000e+00> : vector<1xf32>
    %87 = vector.multi_reduction <add>, %86, %cst_29 [1, 2] : vector<1x2x256xf32> to vector<1xf32>
    %88 = vector.shape_cast %87 : vector<1xf32> to vector<1x1x1xf32>
    %89 = vector.extract %88[0, 0, 0] : f32 from vector<1x1x1xf32>
    %90 = vector.shape_cast %57 : vector<2x256xf32> to vector<1x2x256xf32>
    %cst_30 = arith.constant dense<0.000000e+00> : vector<1xf32>
    %91 = vector.multi_reduction <add>, %90, %cst_30 [1, 2] : vector<1x2x256xf32> to vector<1xf32>
    %92 = vector.shape_cast %91 : vector<1xf32> to vector<1x1x1xf32>
    %93 = vector.extract %92[0, 0, 0] : f32 from vector<1x1x1xf32>
    %94 = vector.shape_cast %58 : vector<2x256xf32> to vector<1x2x256xf32>
    %cst_31 = arith.constant dense<0.000000e+00> : vector<1xf32>
    %95 = vector.multi_reduction <add>, %94, %cst_31 [1, 2] : vector<1x2x256xf32> to vector<1xf32>
    %96 = vector.shape_cast %95 : vector<1xf32> to vector<1x1x1xf32>
    %97 = vector.extract %96[0, 0, 0] : f32 from vector<1x1x1xf32>
    %98 = tpu.iota {dimensions = array<i32: 0>} : vector<8x128xi32>
    %c0_i32_32 = arith.constant 0 : i32
    %99 = vector.broadcast %c0_i32_32 : i32 to vector<8x128xi32>
    %100 = arith.cmpi eq, %98, %99 : vector<8x128xi32>
    %cst_33 = arith.constant 0.000000e+00 : f32
    %101 = vector.broadcast %81 : f32 to vector<8x128xf32>
    %102 = vector.broadcast %cst_33 : f32 to vector<8x128xf32>
    %103 = arith.select %100, %101, %102 : vector<8x128xi1>, vector<8x128xf32>
    %c1_i32_34 = arith.constant 1 : i32
    %104 = vector.broadcast %c1_i32_34 : i32 to vector<8x128xi32>
    %105 = arith.cmpi eq, %98, %104 : vector<8x128xi32>
    %106 = vector.broadcast %85 : f32 to vector<8x128xf32>
    %107 = arith.select %105, %106, %103 : vector<8x128xi1>, vector<8x128xf32>
    %c2_i32_35 = arith.constant 2 : i32
    %108 = vector.broadcast %c2_i32_35 : i32 to vector<8x128xi32>
    %109 = arith.cmpi eq, %98, %108 : vector<8x128xi32>
    %110 = vector.broadcast %89 : f32 to vector<8x128xf32>
    %111 = arith.select %109, %110, %107 : vector<8x128xi1>, vector<8x128xf32>
    %c3_i32_36 = arith.constant 3 : i32
    %112 = vector.broadcast %c3_i32_36 : i32 to vector<8x128xi32>
    %113 = arith.cmpi eq, %98, %112 : vector<8x128xi32>
    %114 = vector.broadcast %93 : f32 to vector<8x128xf32>
    %115 = arith.select %113, %114, %111 : vector<8x128xi1>, vector<8x128xf32>
    %c4_i32_37 = arith.constant 4 : i32
    %116 = vector.broadcast %c4_i32_37 : i32 to vector<8x128xi32>
    %117 = arith.cmpi eq, %98, %116 : vector<8x128xi32>
    %118 = vector.broadcast %97 : f32 to vector<8x128xf32>
    %119 = arith.select %117, %118, %115 : vector<8x128xi1>, vector<8x128xf32>
    %c0_38 = arith.constant 0 : index
    %c0_39 = arith.constant 0 : index
    %c0_40 = arith.constant 0 : index
    %120 = vector.load %arg5[%c0_38, %c0_39, %c0_40] : memref<1x8x128xf32, #tpu.memory_space<vmem>>, vector<1x8x128xf32>
    %121 = vector.shape_cast %120 : vector<1x8x128xf32> to vector<8x128xf32>
    %122 = vector.shape_cast %119 : vector<8x128xf32> to vector<1x8x128xf32>
    tpu.vector_store %arg5[%c0_38, %c0_39, %c0_40], %122 {strides = array<i32>} : memref<1x8x128xf32, #tpu.memory_space<vmem>>, vector<1x8x128xf32>,
    return
  }
  func.func @transform_0(%arg0: i32) -> (i32, i32, i32) {
    %c0_i32 = arith.constant 0 : i32
    %c0_i32_0 = arith.constant 0 : i32
    %c0_i32_1 = arith.constant 0 : i32
    return %c0_i32, %arg0, %c0_i32_0 : i32, i32, i32
  }
  func.func @transform_1(%arg0: i32) -> (i32, i32) {
    %c0_i32 = arith.constant 0 : i32
    %c0_i32_0 = arith.constant 0 : i32
    return %arg0, %c0_i32 : i32, i32
  }
  func.func @transform_2(%arg0: i32) -> (i32, i32) {
    %c0_i32 = arith.constant 0 : i32
    %c0_i32_0 = arith.constant 0 : i32
    return %arg0, %c0_i32 : i32, i32
  }
  func.func @transform_3(%arg0: i32) -> (i32, i32) {
    %c0_i32 = arith.constant 0 : i32
    %c0_i32_0 = arith.constant 0 : i32
    %c0_i32_1 = arith.constant 0 : i32
    return %c0_i32, %c0_i32_0 : i32, i32
  }
  func.func @transform_4(%arg0: i32) -> (i32, i32, i32) {
    %c0_i32 = arith.constant 0 : i32
    %c0_i32_0 = arith.constant 0 : i32
    %c0_i32_1 = arith.constant 0 : i32
    return %arg0, %c0_i32, %c0_i32_0 : i32, i32, i32
  }
}

</mosaic_0001>

<llo_original>
// kernel: metrics_span.1
$region0: #{metrics_span.1}
  #allocation0 [shape = 'u32[]', space=smem, size = 0x4, offset = 0x4, fixed_abs, tag = 'smem constant byte address 0x4 - core index']
  #allocation1 [shape = 'u32[144,128]{1,0:T(1,128)}', space=vmem, size = 0x12000, scoped, tag = 'internal scratch']
  %s0 = inlined_call_operand.vmem [shape: f32[8,2,256], index: 0, kind: input, shape index: {}]
  %s1 = inlined_call_operand.vmem [shape: s32[2,256], index: 1, kind: input, shape index: {}]
  %s2 = inlined_call_operand.vmem [shape: s32[2,256], index: 2, kind: input, shape index: {}]
  %s3 = inlined_call_operand.vmem [shape: s32[1,256], index: 3, kind: input, shape index: {}]
  %s4 = inlined_call_operand.vmem [shape: f32[1,8,128], index: 4, kind: output, shape index: {}]
  %s5 = sld [smem:[#allocation0]]
  $region26: #{metrics_span.1} parent=0
    _
  %s7 = ssub.s32 1, %s5
  %s8 = scalar_select 0, %s7, %s5
  // Predicated region
  $region2: #{metrics_span.1} parent=0 // pred_check
    _
  $region3: #{metrics_span.1} parent=0 // pred_check_branch
    %10 = sbr.rel (0) target = $region5
  $region4: #{metrics_span.1} parent=0 // pred_region
    _
  $region5: #{metrics_span.1} parent=0 // pred_fallthru
    _
  // Predicated region
  $region6: #{metrics_span.1} parent=0 // pred_check
    _
  $region7: #{metrics_span.1} parent=0 // pred_check_branch
    %12 = sbr.rel (0) target = $region9
  $region8: #{metrics_span.1} parent=0 // pred_region
    _
  $region9: #{metrics_span.1} parent=0 // pred_fallthru
    _
  // Predicated region
  $region10: #{metrics_span.1} parent=0 // pred_check
    _
  $region11: #{metrics_span.1} parent=0 // pred_check_branch
    %14 = sbr.rel (0) target = $region13
  $region12: #{metrics_span.1} parent=0 // pred_region
    _
  $region13: #{metrics_span.1} parent=0 // pred_fallthru
    _
  // Predicated region
  $region14: #{metrics_span.1} parent=0 // pred_check
    _
  $region15: #{metrics_span.1} parent=0 // pred_check_branch
    %16 = sbr.rel (0) target = $region17
  $region16: #{metrics_span.1} parent=0 // pred_region
    _
  $region17: #{metrics_span.1} parent=0 // pred_fallthru
    _
  %v17 = vld [vmem:[%s2] sm:$0xf]
  %vm18 = vcmp.ne.s32.totalorder %v17, 0
  %v19 = vsel %vm18, 1, 0
  %v20 = vcvt.s32.f32 %v19
  %v21 = vld [vmem:[%s0] sm:$0xf]
  %v22 = vmul.f32 %v21, %v20
  %s23 = scalar_lea.vmem %s0, 4
  %v24 = vld [vmem:[%s23] sm:$0xf]
  %v25 = vmul.f32 %v24, %v20
  %vm26 = vcmp.gt.f32.partialorder %v25, %v22
  %v27 = vsel %vm26, %v25, %v22
  %v28 = vsel %vm26, 1, 0
  %s29 = scalar_lea.vmem %s0, 8
  %v30 = vld [vmem:[%s29] sm:$0xf]
  %v31 = vmul.f32 %v30, %v20
  %vm32 = vcmp.gt.f32.partialorder %v31, %v27
  %v33 = vsel %vm32, %v31, %v27
  %v34 = vsel %vm32, 2, %v28
  %s35 = scalar_lea.vmem %s0, 12
  %v36 = vld [vmem:[%s35] sm:$0xf]
  %v37 = vmul.f32 %v36, %v20
  %vm38 = vcmp.gt.f32.partialorder %v37, %v33
  %v39 = vsel %vm38, %v37, %v33
  %v40 = vsel %vm38, 3, %v34
  %s41 = scalar_lea.vmem %s0, 16
  %v42 = vld [vmem:[%s41] sm:$0xf]
  %v43 = vmul.f32 %v42, %v20
  %vm44 = vcmp.gt.f32.partialorder %v43, %v39
  %v45 = vsel %vm44, %v43, %v39
  %v46 = vsel %vm44, 4, %v40
  %s47 = scalar_lea.vmem %s0, 20
  %v48 = vld [vmem:[%s47] sm:$0xf]
  %v49 = vmul.f32 %v48, %v20
  %vm50 = vcmp.gt.f32.partialorder %v49, %v45
  %v51 = vsel %vm50, %v49, %v45
  %v52 = vsel %vm50, 5, %v46
  %s53 = scalar_lea.vmem %s0, 24
  %v54 = vld [vmem:[%s53] sm:$0xf]
  %v55 = vmul.f32 %v54, %v20
  %vm56 = vcmp.gt.f32.partialorder %v55, %v51
  %v57 = vsel %vm56, %v55, %v51
  %v58 = vsel %vm56, 6, %v52
  %s59 = scalar_lea.vmem %s0, 28
  %v60 = vld [vmem:[%s59] sm:$0xf]
  %v61 = vmul.f32 %v60, %v20
  %vm62 = vcmp.gt.f32.partialorder %v61, %v57
  %v63 = vsel %vm62, 7, %v58
  %v64 = vld [vmem:[%s1] sm:$0xf]
  %v65 = vcvt.s32.f32 %v64
  %v66 = vcvt.s32.f32 %v63
  %v67 = vld [vmem:[%s3] sm:$0x3]
  %vm68 = vcmp.ne.s32.totalorder %v67, 0
  %v69 = vsel %vm68, 1, 0
  %v70 = vcvt.s32.f32 %v69
  %vm71 = vcmp.ge.s32.totalorder %v64, 1
  %v72 = vsel %vm71, 1, 0
  %v73 = vcvt.s32.f32 %v72
  %vm74 = vcmp.ge.s32.totalorder %v63, 1
  %v75 = vsel %vm74, 1, 0
  %v76 = vcvt.s32.f32 %v75
  %v78 = vlaneseq
  %v79 = vshrl.u32 %v78, 7
  %v80 = vsub.s32 0, %v79
  %v81 = vrot.slane %v70, %v80
  %v82 = vlaneseq
  %v83 = vshrl.u32 %v82, 7
  %v84 = vsub.s32 1, %v83
  %v85 = vrot.slane %v70, %v84
  %v86 = vcombine.low %v81, %v85
  %v88 = vunpack.c.l.s4 1983009808
  %v89 = vunpack.c.0.s8 %v88
  %v90 = vlaneseq
  %v91 = vshrl.u32 %v90, 7
  %v92 = vsub.s32 %v89, %v91
  %v93 = vrot.slane %v86, %v92
  %v95 = vmul.f32 %v76, %v93
  %vm96 = vcmp.eq.s32.totalorder %v63, %v64
  %v97 = vsel %vm96, 1.0, 0.0
  %v98 = vmul.f32 %v97, %v73
  %v101 = vunpack.c.l.s4 1983009808
  %v102 = vunpack.c.0.s8 %v101
  %v103 = vlaneseq
  %v104 = vshrl.u32 %v103, 7
  %v105 = vsub.s32 %v102, %v104
  %v106 = vrot.slane %v98, %v105
  %v107 = vcombine.high %v106, %v106
  %vm110 = vcmask 1041408
  %v111 = vsel %vm110, %v106, 0.0
  %v112 = vsel %vm110, %v107, 0.0
  %v113 = vadd.f32 %v111, %v112
  %114 = vadd.xlane.f32.xlu0 %v113
  %v115 = vpop.xlane.xlu0 %114
  %v116 = vrot.slane %v115, 4
  %v117 = vadd.f32 %v115, %v116
  %v118 = vrot.slane %v117, 2
  %v119 = vadd.f32 %v117, %v118
  %v120 = vrot.slane %v119, 1
  %v121 = vadd.f32 %v119, %v120
  %s122 = vtos %v121
  %v125 = vunpack.c.l.s4 1983009808
  %v126 = vunpack.c.0.s8 %v125
  %v127 = vlaneseq
  %v128 = vshrl.u32 %v127, 7
  %v129 = vsub.s32 %v126, %v128
  %v130 = vrot.slane %v73, %v129
  %v131 = vcombine.high %v130, %v130
  %v134 = vsel %vm110, %v130, 0.0
  %v135 = vsel %vm110, %v131, 0.0
  %v136 = vadd.f32 %v134, %v135
  %137 = vadd.xlane.f32.xlu0 %v136
  %v138 = vpop.xlane.xlu0 %137
  %v139 = vrot.slane %v138, 4
  %v140 = vadd.f32 %v138, %v139
  %v141 = vrot.slane %v140, 2
  %v142 = vadd.f32 %v140, %v141
  %v143 = vrot.slane %v142, 1
  %v144 = vadd.f32 %v142, %v143
  %s145 = vtos %v144
  %v148 = vunpack.c.l.s4 1983009808
  %v149 = vunpack.c.0.s8 %v148
  %v150 = vlaneseq
  %v151 = vshrl.u32 %v150, 7
  %v152 = vsub.s32 %v149, %v151
  %v153 = vrot.slane %v95, %v152
  %v154 = vcombine.high %v153, %v153
  %v157 = vsel %vm110, %v153, 0.0
  %v158 = vsel %vm110, %v154, 0.0
  %v159 = vadd.f32 %v157, %v158
  %160 = vadd.xlane.f32.xlu0 %v159
  %v161 = vpop.xlane.xlu0 %160
  %v162 = vrot.slane %v161, 4
  %v163 = vadd.f32 %v161, %v162
  %v164 = vrot.slane %v163, 2
  %v165 = vadd.f32 %v163, %v164
  %v166 = vrot.slane %v165, 1
  %v167 = vadd.f32 %v165, %v166
  %s168 = vtos %v167
  %v171 = vunpack.c.l.s4 1983009808
  %v172 = vunpack.c.0.s8 %v171
  %v173 = vlaneseq
  %v174 = vshrl.u32 %v173, 7
  %v175 = vsub.s32 %v172, %v174
  %v176 = vrot.slane %v65, %v175
  %v177 = vcombine.high %v176, %v176
  %v180 = vsel %vm110, %v176, 0.0
  %v181 = vsel %vm110, %v177, 0.0
  %v182 = vadd.f32 %v180, %v181
  %183 = vadd.xlane.f32.xlu0 %v182
  %v184 = vpop.xlane.xlu0 %183
  %v185 = vrot.slane %v184, 4
  %v186 = vadd.f32 %v184, %v185
  %v187 = vrot.slane %v186, 2
  %v188 = vadd.f32 %v186, %v187
  %v189 = vrot.slane %v188, 1
  %v190 = vadd.f32 %v188, %v189
  %s191 = vtos %v190
  %v194 = vunpack.c.l.s4 1983009808
  %v195 = vunpack.c.0.s8 %v194
  %v196 = vlaneseq
  %v197 = vshrl.u32 %v196, 7
  %v198 = vsub.s32 %v195, %v197
  %v199 = vrot.slane %v66, %v198
  %v200 = vcombine.high %v199, %v199
  %v203 = vsel %vm110, %v199, 0.0
  %v204 = vsel %vm110, %v200, 0.0
  %v205 = vadd.f32 %v203, %v204
  %206 = vadd.xlane.f32.xlu0 %v205
  %v207 = vpop.xlane.xlu0 %206
  %v208 = vrot.slane %v207, 4
  %v209 = vadd.f32 %v207, %v208
  %v210 = vrot.slane %v209, 2
  %v211 = vadd.f32 %v209, %v210
  %v212 = vrot.slane %v211, 1
  %v213 = vadd.f32 %v211, %v212
  %s214 = vtos %v213
  %v215 = vlaneseq
  %v216 = vshrl.u32 %v215, 7
  %vm217 = vcmp.eq.s32.totalorder %v216, 0
  %v218 = vstv %s122
  %v219 = vsel %vm217, %v218, 0.0
  %vm220 = vcmp.eq.s32.totalorder %v216, 1
  %v221 = vstv %s145
  %v222 = vsel %vm220, %v221, %v219
  %vm223 = vcmp.eq.s32.totalorder %v216, 2
  %v224 = vstv %s168
  %v225 = vsel %vm223, %v224, %v222
  %vm226 = vcmp.eq.s32.totalorder %v216, 3
  %v227 = vstv %s191
  %v228 = vsel %vm226, %v227, %v225
  %vm229 = vcmp.eq.s32.totalorder %v216, 4
  %v230 = vstv %s214
  %v231 = vsel %vm229, %v230, %v228
  %232 = vst [vmem:[%s4] sm:$0xff] %v231
  // Predicated region
  $region18: #{metrics_span.1} parent=0 // pred_check
    _
  $region19: #{metrics_span.1} parent=0 // pred_check_branch
    %234 = sbr.rel (0) target = $region21
  $region20: #{metrics_span.1} parent=0 // pred_region
    _
  $region21: #{metrics_span.1} parent=0 // pred_fallthru
    _
  // Predicated region
  $region22: #{metrics_span.1} parent=0 // pred_check
    _
  $region23: #{metrics_span.1} parent=0 // pred_check_branch
    %236 = sbr.rel (0) target = $region25
  $region24: #{metrics_span.1} parent=0 // pred_region
    _
  $region25: #{metrics_span.1} parent=0 // pred_fallthru
    _

</llo_original>
